<compile_context>
chip_gen: v6e
topology: v6e:2x2x1
jax: 0.10.0
libtpu: 0.0.40
codegen_flags: <defaults>
</compile_context>

<pallas_src>
import jax
import jax.numpy as jnp
from jax.experimental import pallas as pl
from jax.experimental.pallas import tpu as pltpu

_LANES = 128
_SUBLANES = 8


def _vmem_budget(itemsize):
    """Return (vmem_limit_bytes, max element count per input block)."""
    try:
        cap = int(getattr(pltpu.get_tpu_info(), "vmem_capacity_bytes"))
    except Exception:
        cap = 64 * 1024 * 1024  # conservative fallback (v7x-sized)
    # Leave ~25% of physical VMEM for compiler internals; never ask for more
    # than 64 MiB (plenty for this HBM-bound kernel, safe on every generation;
    # the explicit limit is required on v5e whose scoped default is 16 MiB).
    vmem_limit = min((cap * 3) // 4, 64 * 1024 * 1024)
    # Per-step VMEM model:
    #   2 inputs x 2 pipeline buffers x block (input dtype)        -> 4*itemsize/elem
    #   f32 intermediates (p*t, plus casts for sub-32-bit inputs)  -> 4 or 12 B/elem
    inter_bytes = 4 if itemsize >= 4 else 12
    slack = 4 * 1024 * 1024  # outputs, accumulators, semaphores, internals
    max_block_elems = max(_SUBLANES * _LANES,
                          (vmem_limit - slack) // (4 * itemsize + inter_bytes))
    return int(vmem_limit), int(max_block_elems)


def _pick_tile_n(n):
    # Sublane-dim block sizes must be a multiple of 8 or the full extent.
    return 8 if n >= 8 else n


def _dice_kernel_3d(tile_s, s_total, blocks_per_chunk, any_masking):
    """Aligned path: blocks are (tile_n, tile_s, 128) views of (n, s, 128)."""

    def kernel(p_ref, t_ref, inter_ref, union_ref, inter_acc, union_acc):
        c = pl.program_id(0)
        k = pl.program_id(2)

        @pl.when(k == 0)
        def _():
            inter_acc[...] = jnp.zeros_like(inter_acc)
            union_acc[...] = jnp.zeros_like(union_acc)

        p = p_ref[...].astype(jnp.float32)
        t = t_ref[...].astype(jnp.float32)

        def accumulate(pv, tv):
            # Lane-dense partial sums: (tile_n, tile_s, 128) -> (tile_n, 128).
            inter_acc[...] += jnp.sum(pv * tv, axis=1)
            union_acc[...] += jnp.sum(pv, axis=1) + jnp.sum(tv, axis=1)

        if any_masking:
            start = (c * blocks_per_chunk + k) * tile_s
            ragged = start + tile_s > s_total

            @pl.when(jnp.logical_not(ragged))
            def _():
                accumulate(p, t)

            @pl.when(ragged)
            def _():
                # Only the final (partial / overflow) block pays the mask cost.
                row = jax.lax.broadcasted_iota(jnp.int32, p.shape, dimension=1)
                valid = (start + row) < s_total
                accumulate(jnp.where(valid, p, 0.0), jnp.where(valid, t, 0.0))
        else:
            accumulate(p, t)

        @pl.when(k == pl.num_programs(2) - 1)
        def _():
            # Per-(chunk, batch-block) lane-dense partials; wrapper folds lanes.
            inter_ref[...] = inter_acc[...][None, :, :]
            union_ref[...] = union_acc[...][None, :, :]

    return kernel


def _dice_kernel_2d(tile_m, m_total, blocks_per_chunk, any_masking):
    """Unaligned path: blocks are (tile_n, tile_m) slabs of the raw (n, m)."""

    def kernel(p_ref, t_ref, inter_ref, union_ref, inter_acc, union_acc):
        c = pl.program_id(0)
        k = pl.program_id(2)

        @pl.when(k == 0)
        def _():
            inter_acc[...] = jnp.zeros_like(inter_acc)
            union_acc[...] = jnp.zeros_like(union_acc)

        p = p_ref[...].astype(jnp.float32)
        t = t_ref[...].astype(jnp.float32)

        def accumulate(pv, tv):
            inter_acc[...] += jnp.sum(pv * tv, axis=1, keepdims=True)
            union_acc[...] += (jnp.sum(pv, axis=1, keepdims=True)
                               + jnp.sum(tv, axis=1, keepdims=True))

        if any_masking:
            start = (c * blocks_per_chunk + k) * tile_m
            ragged = start + tile_m > m_total

            @pl.when(jnp.logical_not(ragged))
            def _():
                accumulate(p, t)

            @pl.when(ragged)
            def _():
                col = jax.lax.broadcasted_iota(jnp.int32, p.shape, dimension=1)
                valid = (start + col) < m_total
                accumulate(jnp.where(valid, p, 0.0), jnp.where(valid, t, 0.0))
        else:
            accumulate(p, t)

        @pl.when(k == pl.num_programs(2) - 1)
        def _():
            inter_ref[...] = jnp.broadcast_to(inter_acc[...][None, :, :],
                                              inter_ref.shape)
            union_ref[...] = jnp.broadcast_to(union_acc[...][None, :, :],
                                              union_ref.shape)

    return kernel


def binary_dice_score(predict, target, smooth=1e-05, *, block_elems=None):
    assert predict.shape[0] == target.shape[0], \
        "predict & target batch size don't match"
    n = predict.shape[0]

    p = predict.reshape(n, -1)
    t = target.reshape(n, -1)
    assert p.shape == t.shape, "predict & target element count don't match"
    m = p.shape[1]

    itemsize = max(jnp.dtype(p.dtype).itemsize, jnp.dtype(t.dtype).itemsize)
    vmem_limit, max_block_elems = _vmem_budget(itemsize)
    if block_elems is not None:          # test hook: force tiny blocks
        max_block_elems = int(block_elems)

    tile_n = _pick_tile_n(n)
    num_b_blocks = pl.cdiv(n, tile_n)

    lane_aligned = (m % _LANES == 0)
    if lane_aligned:
        # Metadata-only reshape; stream (tile_n, tile_s, 128) blocks.
        s = m // _LANES
        p = p.reshape(n, s, _LANES)
        t = t.reshape(n, s, _LANES)
        tile_s = max_block_elems // (tile_n * _LANES)
        tile_s = max(_SUBLANES, (tile_s // _SUBLANES) * _SUBLANES)
        if tile_s >= s:
            tile_s = s
        num_k_blocks = pl.cdiv(s, tile_s)
        reduce_extent, reduce_tile = s, tile_s
    else:
        # Non-128-multiple feature size: no wrapper-side pad (no extra HBM
        # pass) -- stream the raw (tile_n, tile_m) slabs and mask in-kernel.
        tile_m = max_block_elems // tile_n
        tile_m = max(_LANES, (tile_m // _LANES) * _LANES)
        if tile_m >= m:
            tile_m = m
        num_k_blocks = pl.cdiv(m, tile_m)
        reduce_extent, reduce_tile = m, tile_m

    # Keep both TensorCores busy (v7x megacore) even with a single batch
    # block: split the reduction into 2 independent chunks on a leading
    # "parallel" axis; the wrapper combines the per-chunk partials.
    num_chunks = 2 if (num_b_blocks == 1 and num_k_blocks >= 2) else 1
    blocks_per_chunk = pl.cdiv(num_k_blocks, num_chunks)
    has_overflow = num_chunks * blocks_per_chunk > num_k_blocks
    any_masking = has_overflow or (reduce_extent % reduce_tile != 0)

    if has_overflow:
        # Overflow iterations re-read the last valid block (clamped DMA); the
        # in-kernel mask zeroes their contribution.
        def k_block(c, k):
            return jnp.minimum(c * blocks_per_chunk + k, num_k_blocks - 1)
    else:
        def k_block(c, k):
            return c * blocks_per_chunk + k

    if lane_aligned:
        kernel = _dice_kernel_3d(tile_s, s, blocks_per_chunk, any_masking)
        in_specs = [
            pl.BlockSpec((tile_n, tile_s, _LANES),
                         lambda c, b, k: (b, k_block(c, k), 0)),
            pl.BlockSpec((tile_n, tile_s, _LANES),
                         lambda c, b, k: (b, k_block(c, k), 0)),
        ]
        scratch = [pltpu.VMEM((tile_n, _LANES), jnp.float32),
                   pltpu.VMEM((tile_n, _LANES), jnp.float32)]
    else:
        kernel = _dice_kernel_2d(tile_m, m, blocks_per_chunk, any_masking)
        in_specs = [
            pl.BlockSpec((tile_n, tile_m), lambda c, b, k: (b, k_block(c, k))),
            pl.BlockSpec((tile_n, tile_m), lambda c, b, k: (b, k_block(c, k))),
        ]
        scratch = [pltpu.VMEM((tile_n, 1), jnp.float32),
                   pltpu.VMEM((tile_n, 1), jnp.float32)]

    out_specs = [pl.BlockSpec((1, tile_n, _LANES), lambda c, b, k: (c, b, 0)),
                 pl.BlockSpec((1, tile_n, _LANES), lambda c, b, k: (c, b, 0))]
    out_shape = (jax.ShapeDtypeStruct((num_chunks, n, _LANES), jnp.float32),
                 jax.ShapeDtypeStruct((num_chunks, n, _LANES), jnp.float32))

    # Note: when n % tile_n != 0 the last batch block reads rows past n
    # (garbage); those accumulator rows are clipped at output writeback and
    # never reach HBM, so results are unaffected.
    inter_out, union_out = pl.pallas_call(
        kernel,
        out_shape=out_shape,
        grid_spec=pltpu.PrefetchScalarGridSpec(
            num_scalar_prefetch=0,
            grid=(num_chunks, num_b_blocks, blocks_per_chunk),
            in_specs=in_specs,
            out_specs=out_specs,
            scratch_shapes=scratch,
        ),
        compiler_params=pltpu.CompilerParams(
            dimension_semantics=("parallel", "parallel", "arbitrary"),
            vmem_limit_bytes=vmem_limit,
        ),
        cost_estimate=pl.CostEstimate(
            flops=4 * n * m,
            transcendentals=0,
            bytes_accessed=2 * n * m * itemsize + 2 * num_chunks * n * _LANES * 4,
        ),
    )(p, t)

    if lane_aligned:
        # Kernel emitted lane-dense partials: fold chunks and lanes here.
        intersection = jnp.sum(inter_out, axis=(0, 2))
        union = jnp.sum(union_out, axis=(0, 2))
    else:
        # Kernel already reduced over lanes: fold chunks only.
        intersection = jnp.sum(inter_out[:, :, 0], axis=0)
        union = jnp.sum(union_out[:, :, 0], axis=0)

    return 2.0 * intersection / (union + smooth)


def _ref_dice(predict, target, smooth=1e-05):
    n = predict.shape[0]
    p = predict.reshape(n, -1).astype(jnp.float32)
    t = target.reshape(n, -1).astype(jnp.float32)
    inter = jnp.sum(p * t, axis=1)
    union = jnp.sum(p, axis=1) + jnp.sum(t, axis=1)
    return 2.0 * inter / (union + smooth)


if __name__ == "__main__":
    key = jax.random.PRNGKey(0)
    kp, kt, kp2, kt2, kp3, kt3 = jax.random.split(key, 6)

    # 1) Primary case: NCHW batch=2, channels=4, spatial=16x16 (m % 128 == 0).
    predict = jax.nn.sigmoid(jax.random.normal(kp, (2, 4, 16, 16), jnp.float32))
    target = (jax.random.uniform(kt, (2, 4, 16, 16)) > 0.5).astype(jnp.float32)
    dice = jax.block_until_ready(binary_dice_score(predict, target))
    ref = _ref_dice(predict, target)
    assert dice.shape == (2,), dice.shape
    assert jnp.allclose(dice, ref, rtol=1e-5, atol=1e-6), (dice, ref)

    # 2) Unaligned feature size (m = 315, no wrapper pad) with tiny forced
    #    blocks to exercise the lane mask, chunk split and overflow clamp.
    p2 = jax.nn.sigmoid(jax.random.normal(kp2, (3, 5, 9, 7), jnp.float32))
    t2 = (jax.random.uniform(kt2, (3, 5, 9, 7)) > 0.5).astype(jnp.float32)
    d2 = jax.block_until_ready(binary_dice_score(p2, t2, block_elems=3 * 128))
    assert jnp.allclose(d2, _ref_dice(p2, t2), rtol=1e-5, atol=1e-6)

    # 3) Aligned path with tiny forced blocks: exercises the sublane mask,
    #    chunk split and overflow handling of the (n, s, 128) kernel.
    p3 = jax.nn.sigmoid(jax.random.normal(kp3, (2, 4, 16, 48), jnp.float32))
    t3 = (jax.random.uniform(kt3, (2, 4, 16, 48)) > 0.5).astype(jnp.float32)
    d3 = jax.block_until_ready(binary_dice_score(p3, t3, block_elems=2048))
    assert jnp.allclose(d3, _ref_dice(p3, t3), rtol=1e-5, atol=1e-6)

    print("KERNEL_OK")
</pallas_src>

<mosaic_0001>
module attributes {stable_mosaic.version = 11 : i64} {
  func.func @kernel(%arg0: i32, %arg1: i32, %arg2: i32, %arg3: memref<2x8x128xf32, #tpu.memory_space<vmem>>, %arg4: memref<2x8x128xf32, #tpu.memory_space<vmem>>, %arg5: memref<1x2x128xf32, #tpu.memory_space<vmem>>, %arg6: memref<1x2x128xf32, #tpu.memory_space<vmem>>, %arg7: memref<2x128xf32, #tpu.memory_space<vmem>>, %arg8: memref<2x128xf32, #tpu.memory_space<vmem>>) attributes {dimension_semantics = [#tpu.dimension_semantics<parallel>, #tpu.dimension_semantics<parallel>, #tpu.dimension_semantics<arbitrary>], iteration_bounds = array<i64: 1, 1, 1>, scalar_prefetch = 0 : i64, scratch_operands = 2 : i64, tpu.core_type = #tpu.core_type<tc>, window_params = [{transform_indices = @transform_0, window_bounds = array<i64: 2, 8, 128>}, {transform_indices = @transform_1, window_bounds = array<i64: 2, 8, 128>}, {transform_indices = @transform_2, window_bounds = array<i64: 1, 2, 128>}, {transform_indices = @transform_3, window_bounds = array<i64: 1, 2, 128>}]} {
    %c0_i32 = arith.constant 0 : i32
    %0 = arith.cmpi eq, %arg2, %c0_i32 : i32
    %1 = arith.extui %0 : i1 to i32
    %c0_i32_0 = arith.constant 0 : i32
    %2 = arith.cmpi ne, %1, %c0_i32_0 : i32
    scf.if %2 {
      %cst_18 = arith.constant 0.000000e+00 : f32
      %19 = vector.broadcast %cst_18 : f32 to vector<2x128xf32>
      %c0_19 = arith.constant 0 : index
      %c0_20 = arith.constant 0 : index
      %20 = vector.load %arg7[%c0_19, %c0_20] : memref<2x128xf32, #tpu.memory_space<vmem>>, vector<2x128xf32>
      tpu.vector_store %arg7[%c0_19, %c0_20], %19 {strides = array<i32>} : memref<2x128xf32, #tpu.memory_space<vmem>>, vector<2x128xf32>,
      %cst_21 = arith.constant 0.000000e+00 : f32
      %21 = vector.broadcast %cst_21 : f32 to vector<2x128xf32>
      %c0_22 = arith.constant 0 : index
      %c0_23 = arith.constant 0 : index
      %22 = vector.load %arg8[%c0_22, %c0_23] : memref<2x128xf32, #tpu.memory_space<vmem>>, vector<2x128xf32>
      tpu.vector_store %arg8[%c0_22, %c0_23], %21 {strides = array<i32>} : memref<2x128xf32, #tpu.memory_space<vmem>>, vector<2x128xf32>,
    } else {
    }
    %c0 = arith.constant 0 : index
    %c0_1 = arith.constant 0 : index
    %c0_2 = arith.constant 0 : index
    %3 = vector.load %arg3[%c0, %c0_1, %c0_2] : memref<2x8x128xf32, #tpu.memory_space<vmem>>, vector<2x8x128xf32>
    %c0_3 = arith.constant 0 : index
    %c0_4 = arith.constant 0 : index
    %c0_5 = arith.constant 0 : index
    %4 = vector.load %arg4[%c0_3, %c0_4, %c0_5] : memref<2x8x128xf32, #tpu.memory_space<vmem>>, vector<2x8x128xf32>
    %c0_6 = arith.constant 0 : index
    %c0_7 = arith.constant 0 : index
    %5 = vector.load %arg7[%c0_6, %c0_7] : memref<2x128xf32, #tpu.memory_space<vmem>>, vector<2x128xf32>
    %6 = arith.mulf %3, %4 : vector<2x8x128xf32>
    %cst = arith.constant dense<0.000000e+00> : vector<2x128xf32>
    %7 = vector.multi_reduction <add>, %6, %cst [1] : vector<2x8x128xf32> to vector<2x128xf32>
    %8 = arith.addf %5, %7 : vector<2x128xf32>
    %c0_8 = arith.constant 0 : index
    %c0_9 = arith.constant 0 : index
    %9 = vector.load %arg7[%c0_8, %c0_9] : memref<2x128xf32, #tpu.memory_space<vmem>>, vector<2x128xf32>
    tpu.vector_store %arg7[%c0_8, %c0_9], %8 {strides = array<i32>} : memref<2x128xf32, #tpu.memory_space<vmem>>, vector<2x128xf32>,
    %c0_10 = arith.constant 0 : index
    %c0_11 = arith.constant 0 : index
    %10 = vector.load %arg8[%c0_10, %c0_11] : memref<2x128xf32, #tpu.memory_space<vmem>>, vector<2x128xf32>
    %cst_12 = arith.constant dense<0.000000e+00> : vector<2x128xf32>
    %11 = vector.multi_reduction <add>, %3, %cst_12 [1] : vector<2x8x128xf32> to vector<2x128xf32>
    %cst_13 = arith.constant dense<0.000000e+00> : vector<2x128xf32>
    %12 = vector.multi_reduction <add>, %4, %cst_13 [1] : vector<2x8x128xf32> to vector<2x128xf32>
    %13 = arith.addf %11, %12 : vector<2x128xf32>
    %14 = arith.addf %10, %13 : vector<2x128xf32>
    %c0_14 = arith.constant 0 : index
    %c0_15 = arith.constant 0 : index
    %15 = vector.load %arg8[%c0_14, %c0_15] : memref<2x128xf32, #tpu.memory_space<vmem>>, vector<2x128xf32>
    tpu.vector_store %arg8[%c0_14, %c0_15], %14 {strides = array<i32>} : memref<2x128xf32, #tpu.memory_space<vmem>>, vector<2x128xf32>,
    %c0_i32_16 = arith.constant 0 : i32
    %16 = arith.cmpi eq, %arg2, %c0_i32_16 : i32
    %17 = arith.extui %16 : i1 to i32
    %c0_i32_17 = arith.constant 0 : i32
    %18 = arith.cmpi ne, %17, %c0_i32_17 : i32
    scf.if %18 {
      %c0_18 = arith.constant 0 : index
      %c0_19 = arith.constant 0 : index
      %19 = vector.load %arg7[%c0_18, %c0_19] : memref<2x128xf32, #tpu.memory_space<vmem>>, vector<2x128xf32>
      %20 = vector.shape_cast %19 : vector<2x128xf32> to vector<1x2x128xf32>
      %c0_20 = arith.constant 0 : index
      %c0_21 = arith.constant 0 : index
      %c0_22 = arith.constant 0 : index
      %21 = vector.load %arg5[%c0_20, %c0_21, %c0_22] : memref<1x2x128xf32, #tpu.memory_space<vmem>>, vector<1x2x128xf32>
      tpu.vector_store %arg5[%c0_20, %c0_21, %c0_22], %20 {strides = array<i32>} : memref<1x2x128xf32, #tpu.memory_space<vmem>>, vector<1x2x128xf32>,
      %c0_23 = arith.constant 0 : index
      %c0_24 = arith.constant 0 : index
      %22 = vector.load %arg8[%c0_23, %c0_24] : memref<2x128xf32, #tpu.memory_space<vmem>>, vector<2x128xf32>
      %23 = vector.shape_cast %22 : vector<2x128xf32> to vector<1x2x128xf32>
      %c0_25 = arith.constant 0 : index
      %c0_26 = arith.constant 0 : index
      %c0_27 = arith.constant 0 : index
      %24 = vector.load %arg6[%c0_25, %c0_26, %c0_27] : memref<1x2x128xf32, #tpu.memory_space<vmem>>, vector<1x2x128xf32>
      tpu.vector_store %arg6[%c0_25, %c0_26, %c0_27], %23 {strides = array<i32>} : memref<1x2x128xf32, #tpu.memory_space<vmem>>, vector<1x2x128xf32>,
    } else {
    }
    return
  }
  func.func @transform_0(%arg0: i32, %arg1: i32, %arg2: i32) -> (i32, i32, i32) {
    %c1_i32 = arith.constant 1 : i32
    %0 = arith.muli %arg0, %c1_i32 : i32
    %1 = arith.addi %0, %arg2 : i32
    %c0_i32 = arith.constant 0 : i32
    %c0_i32_0 = arith.constant 0 : i32
    return %arg1, %1, %c0_i32 : i32, i32, i32
  }
  func.func @transform_1(%arg0: i32, %arg1: i32, %arg2: i32) -> (i32, i32, i32) {
    %c1_i32 = arith.constant 1 : i32
    %0 = arith.muli %arg0, %c1_i32 : i32
    %1 = arith.addi %0, %arg2 : i32
    %c0_i32 = arith.constant 0 : i32
    %c0_i32_0 = arith.constant 0 : i32
    return %arg1, %1, %c0_i32 : i32, i32, i32
  }
  func.func @transform_2(%arg0: i32, %arg1: i32, %arg2: i32) -> (i32, i32, i32) {
    %c0_i32 = arith.constant 0 : i32
    %c0_i32_0 = arith.constant 0 : i32
    return %arg0, %arg1, %c0_i32 : i32, i32, i32
  }
  func.func @transform_3(%arg0: i32, %arg1: i32, %arg2: i32) -> (i32, i32, i32) {
    %c0_i32 = arith.constant 0 : i32
    %c0_i32_0 = arith.constant 0 : i32
    return %arg0, %arg1, %c0_i32 : i32, i32, i32
  }
}

</mosaic_0001>

<llo_original>
// kernel: tpu_custom_call.1
$region0: #{tpu_custom_call.1}
  #allocation0 [shape = 'u32[]', space=smem, size = 0x4, offset = 0x4, fixed_abs, tag = 'smem constant byte address 0x4 - core index']
  #allocation1 [shape = 'u32[144,128]{1,0:T(1,128)}', space=vmem, size = 0x12000, scoped, tag = 'internal scratch']
  #allocation2 [shape = 'f32[2,128]{1,0:T(2,128)}', space=vmem, size = 0x400, scoped, tag = 'scratch operand']
  #allocation3 [shape = 'f32[2,128]{1,0:T(2,128)}', space=vmem, size = 0x400, scoped, tag = 'scratch operand']
  %s0 = inlined_call_operand.hbm [shape: f32[2,8,128], index: 0, kind: input, shape index: {}]
  %s1 = inlined_call_operand.hbm [shape: f32[2,8,128], index: 1, kind: input, shape index: {}]
  %s2 = inlined_call_operand.hbm [shape: f32[1,2,128], index: 2, kind: output, shape index: {0}]
  %s3 = inlined_call_operand.hbm [shape: f32[1,2,128], index: 3, kind: output, shape index: {1}]
  %4 = xla_tuple %s2, %s3
  %s5 = sld [smem:[#allocation0]]
  $region42: #{tpu_custom_call.1} parent=0
    _
  %s7 = ssub.s32 1, %s5
  %s8 = scalar_select 0, %s7, %s5
  $region1: #{tpu_custom_call.1} parent=0
    #allocation4 [shape = 'u8[8192]{0}', space=vmem, size = 0x2000, scoped, tag = 'input window, operand 0, single buffered']
    #allocation5 [shape = 's32[1]{0}', space=sflag, size = 0x4, scoped, tag = 'scoped memory for tpu_custom_call.1']
    #allocation6 [shape = 's32[1]{0}', space=sflag, size = 0x4, scoped, tag = 'scoped memory for tpu_custom_call.1']
    #allocation7 [shape = 'u8[8192]{0}', space=vmem, size = 0x2000, scoped, tag = 'input window, operand 1, single buffered']
    #allocation8 [shape = 's32[1]{0}', space=sflag, size = 0x4, scoped, tag = 'scoped memory for tpu_custom_call.1']
    #allocation9 [shape = 'u8[1024]{0}', space=vmem, size = 0x400, scoped, tag = 'output window, operand 0, single buffered']
    #allocation10 [shape = 'u8[1024]{0}', space=vmem, size = 0x400, scoped, tag = 'output window, operand 1, single buffered']
    #allocation11 [shape = 's32[1]{0}', space=sflag, size = 0x4, scoped, tag = 'scoped memory for tpu_custom_call.1']
    %9 = vsyncpa [#allocation5], 0
    %10 = vsyncpa [#allocation8], 0
    %11 = vsyncpa [#allocation6], 0
    %12 = vsyncpa [#allocation11], 0
    // Predicated region
    $region2: #{tpu_custom_call.1} parent=1 // pred_check
      _
    $region3: #{tpu_custom_call.1} parent=1 // pred_check_branch
      %14 = sbr.rel (0) target = $region5
    $region4: #{tpu_custom_call.1} parent=1 // pred_region
      %s15 = sadd.s32 0, 0
      %s17 = ssub.s32 256, 256
      %18 = vsyncadd [#allocation5], %s17
      %s19 = smul.addr %s15, 128
      %s20 = scalar_lea.hbm %s0, %s19
      %s21 = sshll.u32 [#allocation4], 4
      %s22 = int_to_ptr.vmem [resolvable:$true] %s21
      %27 = dma.hbm_to_vmem [thread:$0]  %s20, 256, %s22, [#allocation5], 128, 128, 8
    $region5: #{tpu_custom_call.1} parent=1 // pred_fallthru
      _
    // Predicated region
    $region6: #{tpu_custom_call.1} parent=1 // pred_check
      _
    $region7: #{tpu_custom_call.1} parent=1 // pred_check_branch
      %29 = sbr.rel (0) target = $region9
    $region8: #{tpu_custom_call.1} parent=1 // pred_region
      %s30 = sadd.s32 0, 0
      %s32 = ssub.s32 256, 256
      %33 = vsyncadd [#allocation8], %s32
      %s34 = smul.addr %s30, 128
      %s35 = scalar_lea.hbm %s1, %s34
      %s36 = sshll.u32 [#allocation7], 4
      %s37 = int_to_ptr.vmem [resolvable:$true] %s36
      %42 = dma.hbm_to_vmem [thread:$0]  %s35, 256, %s37, [#allocation8], 128, 128, 8
    $region9: #{tpu_custom_call.1} parent=1 // pred_fallthru
      _
    // Predicated region
    $region10: #{tpu_custom_call.1} parent=1 // pred_check
      _
    $region11: #{tpu_custom_call.1} parent=1 // pred_check_branch
      %44 = sbr.rel (0) target = $region13
    $region12: #{tpu_custom_call.1} parent=1 // pred_region
      %45 = dma.done [#allocation5], 256
    $region13: #{tpu_custom_call.1} parent=1 // pred_fallthru
      _
    // Predicated region
    $region14: #{tpu_custom_call.1} parent=1 // pred_check
      _
    $region15: #{tpu_custom_call.1} parent=1 // pred_check_branch
      %47 = sbr.rel (0) target = $region17
    $region16: #{tpu_custom_call.1} parent=1 // pred_region
      %48 = dma.done [#allocation8], 256
    $region17: #{tpu_custom_call.1} parent=1 // pred_fallthru
      _
    %s49 = sadd.s32 0, 0
    %s50 = sadd.s32 0, 0
    %p51 = scmp.eq.s32.totalorder 0, 0
    // Predicated region
    $region18: #{tpu_custom_call.1} parent=1 // pred_check
      %p52 = pneg %p51
    $region19: #{tpu_custom_call.1} parent=1 // pred_check_branch
      %54 = sbr.rel (%p52) target = $region21
    $region20: #{tpu_custom_call.1} parent=1 // pred_region
      %55 = vst [vmem:[#allocation2] sm:$0x3] 0.0
      %56 = vst [vmem:[#allocation3] sm:$0x3] 0.0
    $region21: #{tpu_custom_call.1} parent=1 // pred_fallthru
      _
    %v57 = vld [vmem:[#allocation4] sm:$0xff]
    %v58 = vld [vmem:[#allocation4 + $0x8] sm:$0xff]
    %v59 = vld [vmem:[#allocation7] sm:$0xff]
    %v60 = vld [vmem:[#allocation7 + $0x8] sm:$0xff]
    %v61 = vld [vmem:[#allocation2] sm:$0x3]
    %v62 = vmul.f32 %v57, %v59
    %v63 = vmul.f32 %v58, %v60
    %v64 = vrot.slane %v62, 4
    %v65 = vadd.f32 %v62, %v64
    %v66 = vrot.slane %v65, 2
    %v67 = vadd.f32 %v65, %v66
    %v68 = vrot.slane %v67, 1
    %v69 = vadd.f32 %v67, %v68
    %v70 = vrot.slane %v63, 4
    %v71 = vadd.f32 %v63, %v70
    %v72 = vrot.slane %v71, 2
    %v73 = vadd.f32 %v71, %v72
    %v74 = vrot.slane %v73, 1
    %v75 = vadd.f32 %v73, %v74
    %vm78 = vcmask 1041409
    %v79 = vsel %vm78, %v75, %v69
    %v81 = vadd.f32 %v61, %v79
    %82 = vst [vmem:[#allocation2] sm:$0x3] %v81
    %v83 = vld [vmem:[#allocation3] sm:$0x3]
    %v84 = vrot.slane %v57, 4
    %v85 = vadd.f32 %v57, %v84
    %v86 = vrot.slane %v85, 2
    %v87 = vadd.f32 %v85, %v86
    %v88 = vrot.slane %v87, 1
    %v89 = vadd.f32 %v87, %v88
    %v90 = vrot.slane %v58, 4
    %v91 = vadd.f32 %v58, %v90
    %v92 = vrot.slane %v91, 2
    %v93 = vadd.f32 %v91, %v92
    %v94 = vrot.slane %v93, 1
    %v95 = vadd.f32 %v93, %v94
    %v96 = vrot.slane %v59, 4
    %v97 = vadd.f32 %v59, %v96
    %v98 = vrot.slane %v97, 2
    %v99 = vadd.f32 %v97, %v98
    %v100 = vrot.slane %v99, 1
    %v101 = vadd.f32 %v99, %v100
    %v102 = vrot.slane %v60, 4
    %v103 = vadd.f32 %v60, %v102
    %v104 = vrot.slane %v103, 2
    %v105 = vadd.f32 %v103, %v104
    %v106 = vrot.slane %v105, 1
    %v107 = vadd.f32 %v105, %v106
    %v108 = vadd.f32 %v89, %v101
    %v109 = vadd.f32 %v95, %v107
    %v112 = vsel %vm78, %v109, %v108
    %v114 = vadd.f32 %v83, %v112
    %115 = vst [vmem:[#allocation3] sm:$0x3] %v114
    // Predicated region
    $region22: #{tpu_custom_call.1} parent=1 // pred_check
      %p116 = pneg %p51
    $region23: #{tpu_custom_call.1} parent=1 // pred_check_branch
      %118 = sbr.rel (%p116) target = $region25
    $region24: #{tpu_custom_call.1} parent=1 // pred_region
      %v119 = vld [vmem:[#allocation2] sm:$0x3]
      %120 = vst [vmem:[#allocation9] sm:$0x3] %v119
      %v121 = vld [vmem:[#allocation3] sm:$0x3]
      %122 = vst [vmem:[#allocation10] sm:$0x3] %v121
    $region25: #{tpu_custom_call.1} parent=1 // pred_fallthru
      _
    // Predicated region
    $region26: #{tpu_custom_call.1} parent=1 // pred_check
      _
    $region27: #{tpu_custom_call.1} parent=1 // pred_check_branch
      %124 = sbr.rel (0) target = $region29
    $region28: #{tpu_custom_call.1} parent=1 // pred_region
      %s126 = ssub.s32 32, 32
      %127 = vsyncadd [#allocation6], %s126
      %s129 = sshll.u32 [#allocation9], 4
      %s130 = int_to_ptr.vmem [resolvable:$true] %s129
      %132 = dma.vmem_to_hbm [thread:$0]  %s130, 32, %s2, [#allocation6]
    $region29: #{tpu_custom_call.1} parent=1 // pred_fallthru
      _
    // Predicated region
    $region30: #{tpu_custom_call.1} parent=1 // pred_check
      _
    $region31: #{tpu_custom_call.1} parent=1 // pred_check_branch
      %134 = sbr.rel (0) target = $region33
    $region32: #{tpu_custom_call.1} parent=1 // pred_region
      %s136 = ssub.s32 32, 32
      %137 = vsyncadd [#allocation11], %s136
      %s139 = sshll.u32 [#allocation10], 4
      %s140 = int_to_ptr.vmem [resolvable:$true] %s139
      %142 = dma.vmem_to_hbm [thread:$0]  %s140, 32, %s3, [#allocation11]
    $region33: #{tpu_custom_call.1} parent=1 // pred_fallthru
      _
    // Predicated region
    $region34: #{tpu_custom_call.1} parent=1 // pred_check
      _
    $region35: #{tpu_custom_call.1} parent=1 // pred_check_branch
      %144 = sbr.rel (0) target = $region37
    $region36: #{tpu_custom_call.1} parent=1 // pred_region
      %145 = dma.done [#allocation6], 32
    $region37: #{tpu_custom_call.1} parent=1 // pred_fallthru
      _
    // Predicated region
    $region38: #{tpu_custom_call.1} parent=1 // pred_check
      _
    $region39: #{tpu_custom_call.1} parent=1 // pred_check_branch
      %147 = sbr.rel (0) target = $region41
    $region40: #{tpu_custom_call.1} parent=1 // pred_region
      %148 = dma.done [#allocation11], 32
    $region41: #{tpu_custom_call.1} parent=1 // pred_fallthru
      _
    %149 = vsyncpa [#allocation5], 1
    %150 = vsyncpa [#allocation8], 1
    %151 = vsyncpa [#allocation6], 1
    %152 = vsyncpa [#allocation11], 1

</llo_original>
